<compile_context>
chip_gen: v6e
topology: v6e:2x2x1
jax: 0.10.0
libtpu: 0.0.40
codegen_flags: <defaults>
</compile_context>

<pallas_src>
import jax
import jax.numpy as jnp
import numpy as np
from jax.experimental import pallas as pl
from jax.experimental.pallas import tpu as pltpu


def _swish(x):
    # x * sigmoid(x) = x / (1 + exp(-x)); exp and reciprocal both go to the EUP slot.
    return x * pl.reciprocal(1.0 + jnp.exp(-x), approx=True)


def qnetwork_kernel(s_ref, a_ref,
                    w1s_ref, w1a_ref, b1_ref,
                    w2_ref, b2_ref,
                    wh_ref, bh_ref,
                    q_ref):
    # ---- fused layer 1 (both Q branches; concat folded into split weights) ----
    h = (jnp.dot(s_ref[...], w1s_ref[...], preferred_element_type=jnp.float32)
         + jnp.dot(a_ref[...], w1a_ref[...], preferred_element_type=jnp.float32)
         + b1_ref[...])
    h = _swish(h)

    # ---- fused layer 2: block-diagonal (2H, 2H) weight, one MXU matmul ----
    h = jnp.dot(h.astype(w2_ref.dtype), w2_ref[...],
                preferred_element_type=jnp.float32) + b2_ref[...]
    h = _swish(h)

    # ---- heads: (H -> 1) projections as VPU multiply + lane reduction ----
    H = wh_ref.shape[1]
    q1 = jnp.sum(h[:, :H] * wh_ref[0:1, :], axis=-1, keepdims=True)
    q2 = jnp.sum(h[:, H:] * wh_ref[1:2, :], axis=-1, keepdims=True)
    q_ref[...] = (jnp.concatenate([q1, q2], axis=-1) + bh_ref[...]).astype(q_ref.dtype)


@jax.jit
def qnetwork_forward(state, action, packed):
    (w1s, w1a, b1, w2bd, b2, wh, bh) = packed
    B, ni = state.shape
    na = action.shape[1]
    H2 = w1s.shape[1]          # 2 * hidden_dim (both branches fused)
    H = H2 // 2

    # Batch tile: 512 rows (well under v7x's 64 MiB VMEM even double-buffered);
    # small batches use a single full-extent tile.
    TB = B if B <= 512 else 512
    grid = (pl.cdiv(B, TB),)

    mm_dtype = w1s.dtype
    s = state.astype(mm_dtype)
    a = action.astype(mm_dtype)

    tiled = lambda i: (i, 0)   # batch-tiled operands
    const = lambda i: (0, 0)   # VMEM-resident weights/biases

    cost = pl.CostEstimate(
        flops=int(2 * B * ((ni + na) * H2 + H2 * H2 + H2)),
        transcendentals=int(2 * B * H2),
        bytes_accessed=int(B * (ni + na) * mm_dtype.itemsize + B * 2 * 4
                           + (ni + na) * H2 * mm_dtype.itemsize
                           + H2 * H2 * mm_dtype.itemsize
                           + 2 * H * 4 + (2 * H2 + 2) * 4),
    )

    q = pl.pallas_call(
        qnetwork_kernel,
        out_shape=jax.ShapeDtypeStruct((B, 2), jnp.float32),
        grid_spec=pltpu.PrefetchScalarGridSpec(
            num_scalar_prefetch=0,
            grid=grid,
            in_specs=[
                pl.BlockSpec((TB, ni), tiled),    # state
                pl.BlockSpec((TB, na), tiled),    # action
                pl.BlockSpec((ni, H2), const),    # W1 state rows (fused branches)
                pl.BlockSpec((na, H2), const),    # W1 action rows (fused branches)
                pl.BlockSpec((1, H2), const),     # b1 | b5
                pl.BlockSpec((H2, H2), const),    # blockdiag(W2, W6)
                pl.BlockSpec((1, H2), const),     # b2 | b6
                pl.BlockSpec((2, H), const),      # [w4.T ; w7.T]
                pl.BlockSpec((1, 2), const),      # [b4 | b7]
            ],
            out_specs=pl.BlockSpec((TB, 2), tiled),
        ),
        compiler_params=pltpu.CompilerParams(
            dimension_semantics=("parallel",),
            vmem_limit_bytes=32 * 1024 * 1024,
        ),
        cost_estimate=cost,
    )(s, a, w1s, w1a, b1, w2bd, b2, wh, bh)

    return q[:, 0:1], q[:, 1:2]


def xavier_uniform(key, fan_in, fan_out, gain=1.0):
    # Matches torch.nn.init.xavier_uniform_ with gain=1.
    bound = gain * float(np.sqrt(6.0 / (fan_in + fan_out)))
    w = jax.random.uniform(key, (fan_out, fan_in), jnp.float32, -bound, bound)
    return w.T   # (in_features, out_features) so forward is x @ W


def init_params(key, num_inputs, num_actions, hidden_dim):
    d_in = num_inputs + num_actions
    keys = jax.random.split(key, 6)
    # linear3 is initialized in the PyTorch module but unused in forward(); skipped.
    w1 = xavier_uniform(keys[0], d_in, hidden_dim)
    w2 = xavier_uniform(keys[1], hidden_dim, hidden_dim)
    w4 = xavier_uniform(keys[2], hidden_dim, 1)
    w5 = xavier_uniform(keys[3], d_in, hidden_dim)
    w6 = xavier_uniform(keys[4], hidden_dim, hidden_dim)
    w7 = xavier_uniform(keys[5], hidden_dim, 1)
    zeros = lambda n: jnp.zeros((1, n), jnp.float32)
    return (w1, zeros(hidden_dim), w2, zeros(hidden_dim), w4, zeros(1),
            w5, zeros(hidden_dim), w6, zeros(hidden_dim), w7, zeros(1))


def pack_params(params, num_inputs, mm_dtype=jnp.bfloat16):
    """Fuse the twin-Q branch weights into wide / block-diagonal kernel operands."""
    (w1, b1, w2, b2, w4, b4, w5, b5, w6, b6, w7, b7) = params
    H = w1.shape[1]
    # Layer 1: hstack branch weights -> (d_in, 2H); split rows by state/action.
    w1f = jnp.concatenate([w1, w5], axis=1)
    w1s = w1f[:num_inputs].astype(mm_dtype)
    w1a = w1f[num_inputs:].astype(mm_dtype)
    b1f = jnp.concatenate([b1, b5], axis=1)                       # (1, 2H) f32
    # Layer 2: block-diagonal so one matmul serves both branches.
    z = jnp.zeros((H, H), jnp.float32)
    w2bd = jnp.block([[w2, z], [z, w6]]).astype(mm_dtype)         # (2H, 2H)
    b2f = jnp.concatenate([b2, b6], axis=1)                       # (1, 2H) f32
    # Heads as rows of (2, H), applied in-kernel via VPU multiply + reduce.
    wh = jnp.concatenate([w4.T, w7.T], axis=0)                    # (2, H) f32
    bh = jnp.concatenate([b4, b7], axis=1)                        # (1, 2) f32
    return (w1s, w1a, b1f, w2bd, b2f, wh, bh)


def qnetwork_reference(state, action, params):
    (w1, b1, w2, b2, w4, b4, w5, b5, w6, b6, w7, b7) = params
    swish = lambda x: x * jax.nn.sigmoid(x)
    xu = jnp.concatenate([state, action], axis=1)
    h1 = swish(swish(xu @ w1 + b1) @ w2 + b2)
    h2 = swish(swish(xu @ w5 + b5) @ w6 + b6)
    return h1 @ w4 + b4, h2 @ w7 + b7


if __name__ == "__main__":
    num_inputs, num_actions, hidden_dim = 8, 4, 32
    batch = 2

    key = jax.random.PRNGKey(0)
    k_params, k_state, k_action = jax.random.split(key, 3)

    params = init_params(k_params, num_inputs, num_actions, hidden_dim)
    packed = pack_params(params, num_inputs)

    state = jax.random.normal(k_state, (batch, num_inputs), jnp.float32)
    action = jax.random.normal(k_action, (batch, num_actions), jnp.float32)

    q1, q2 = qnetwork_forward(state, action, packed)
    q1, q2 = jax.block_until_ready((q1, q2))

    q1_ref, q2_ref = qnetwork_reference(state, action, params)
    # bf16 MXU operands + approx EUP reciprocal in swish -> bf16-appropriate tolerance.
    np.testing.assert_allclose(np.asarray(q1), np.asarray(q1_ref), rtol=3e-2, atol=3e-2)
    np.testing.assert_allclose(np.asarray(q2), np.asarray(q2_ref), rtol=3e-2, atol=3e-2)

    print("KERNEL_OK")
</pallas_src>

<mosaic_0001>
module attributes {stable_mosaic.version = 11 : i64} {
  func.func @qnetwork_kernel(%arg0: i32, %arg1: memref<2x8xbf16, #tpu.memory_space<vmem>>, %arg2: memref<2x4xbf16, #tpu.memory_space<vmem>>, %arg3: memref<8x64xbf16, #tpu.memory_space<vmem>>, %arg4: memref<4x64xbf16, #tpu.memory_space<vmem>>, %arg5: memref<1x64xf32, #tpu.memory_space<vmem>>, %arg6: memref<64x64xbf16, #tpu.memory_space<vmem>>, %arg7: memref<1x64xf32, #tpu.memory_space<vmem>>, %arg8: memref<2x32xf32, #tpu.memory_space<vmem>>, %arg9: memref<1x2xf32, #tpu.memory_space<vmem>>, %arg10: memref<2x2xf32, #tpu.memory_space<vmem>>) attributes {dimension_semantics = [#tpu.dimension_semantics<parallel>], iteration_bounds = array<i64: 1>, scalar_prefetch = 0 : i64, scratch_operands = 0 : i64, tpu.core_type = #tpu.core_type<tc>, window_params = [{transform_indices = @transform_0, window_bounds = array<i64: 2, 8>}, {transform_indices = @transform_1, window_bounds = array<i64: 2, 4>}, {pipeline_mode = #tpu.pipeline_mode<synchronous>, transform_indices = @transform_2, window_bounds = array<i64: 8, 64>}, {pipeline_mode = #tpu.pipeline_mode<synchronous>, transform_indices = @transform_3, window_bounds = array<i64: 4, 64>}, {pipeline_mode = #tpu.pipeline_mode<synchronous>, transform_indices = @transform_4, window_bounds = array<i64: 1, 64>}, {pipeline_mode = #tpu.pipeline_mode<synchronous>, transform_indices = @transform_5, window_bounds = array<i64: 64, 64>}, {pipeline_mode = #tpu.pipeline_mode<synchronous>, transform_indices = @transform_6, window_bounds = array<i64: 1, 64>}, {pipeline_mode = #tpu.pipeline_mode<synchronous>, transform_indices = @transform_7, window_bounds = array<i64: 2, 32>}, {pipeline_mode = #tpu.pipeline_mode<synchronous>, transform_indices = @transform_8, window_bounds = array<i64: 1, 2>}, {transform_indices = @transform_9, window_bounds = array<i64: 2, 2>}]} {
    %c0 = arith.constant 0 : index
    %c0_0 = arith.constant 0 : index
    %0 = vector.load %arg1[%c0, %c0_0] : memref<2x8xbf16, #tpu.memory_space<vmem>>, vector<2x8xbf16>
    %c0_1 = arith.constant 0 : index
    %c0_2 = arith.constant 0 : index
    %1 = vector.load %arg3[%c0_1, %c0_2] : memref<8x64xbf16, #tpu.memory_space<vmem>>, vector<8x64xbf16>
    %cst = arith.constant dense<0.000000e+00> : vector<2x64xf32>
    %2 = tpu.matmul %0, %1, %cst {dimension_numbers = #tpu.dot_dimension_numbers<[1], [0], [0], [1], [0, 0, 1, 1], [], []>} : vector<2x8xbf16>, vector<8x64xbf16>, vector<2x64xf32> -> vector<2x64xf32>
    %c0_3 = arith.constant 0 : index
    %c0_4 = arith.constant 0 : index
    %3 = vector.load %arg2[%c0_3, %c0_4] : memref<2x4xbf16, #tpu.memory_space<vmem>>, vector<2x4xbf16>
    %c0_5 = arith.constant 0 : index
    %c0_6 = arith.constant 0 : index
    %4 = vector.load %arg4[%c0_5, %c0_6] : memref<4x64xbf16, #tpu.memory_space<vmem>>, vector<4x64xbf16>
    %cst_7 = arith.constant dense<0.000000e+00> : vector<2x64xf32>
    %5 = tpu.matmul %3, %4, %cst_7 {dimension_numbers = #tpu.dot_dimension_numbers<[1], [0], [0], [1], [0, 0, 1, 1], [], []>} : vector<2x4xbf16>, vector<4x64xbf16>, vector<2x64xf32> -> vector<2x64xf32>
    %6 = arith.addf %2, %5 : vector<2x64xf32>
    %c0_8 = arith.constant 0 : index
    %c0_9 = arith.constant 0 : index
    %7 = vector.load %arg5[%c0_8, %c0_9] : memref<1x64xf32, #tpu.memory_space<vmem>>, vector<1x64xf32>
    %8 = vector.broadcast %7 : vector<1x64xf32> to vector<2x64xf32>
    %9 = arith.addf %6, %8 : vector<2x64xf32>
    %cst_10 = arith.constant 0.000000e+00 : f32
    %10 = vector.broadcast %cst_10 : f32 to vector<2x64xf32>
    %11 = arith.subf %10, %9 : vector<2x64xf32>
    %12 = math.exp %11 : vector<2x64xf32>
    %cst_11 = arith.constant 1.000000e+00 : f32
    %13 = vector.broadcast %cst_11 : f32 to vector<2x64xf32>
    %14 = arith.addf %13, %12 : vector<2x64xf32>
    %15 = tpu.reciprocal %14 {approx = true} : vector<2x64xf32> -> vector<2x64xf32>
    %16 = arith.mulf %9, %15 : vector<2x64xf32>
    %17 = arith.truncf %16 : vector<2x64xf32> to vector<2x64xbf16>
    %c0_12 = arith.constant 0 : index
    %c0_13 = arith.constant 0 : index
    %18 = vector.load %arg6[%c0_12, %c0_13] : memref<64x64xbf16, #tpu.memory_space<vmem>>, vector<64x64xbf16>
    %cst_14 = arith.constant dense<0.000000e+00> : vector<2x64xf32>
    %19 = tpu.matmul %17, %18, %cst_14 {dimension_numbers = #tpu.dot_dimension_numbers<[1], [0], [0], [1], [0, 0, 1, 1], [], []>} : vector<2x64xbf16>, vector<64x64xbf16>, vector<2x64xf32> -> vector<2x64xf32>
    %c0_15 = arith.constant 0 : index
    %c0_16 = arith.constant 0 : index
    %20 = vector.load %arg7[%c0_15, %c0_16] : memref<1x64xf32, #tpu.memory_space<vmem>>, vector<1x64xf32>
    %21 = vector.broadcast %20 : vector<1x64xf32> to vector<2x64xf32>
    %22 = arith.addf %19, %21 : vector<2x64xf32>
    %cst_17 = arith.constant 0.000000e+00 : f32
    %23 = vector.broadcast %cst_17 : f32 to vector<2x64xf32>
    %24 = arith.subf %23, %22 : vector<2x64xf32>
    %25 = math.exp %24 : vector<2x64xf32>
    %cst_18 = arith.constant 1.000000e+00 : f32
    %26 = vector.broadcast %cst_18 : f32 to vector<2x64xf32>
    %27 = arith.addf %26, %25 : vector<2x64xf32>
    %28 = tpu.reciprocal %27 {approx = true} : vector<2x64xf32> -> vector<2x64xf32>
    %29 = arith.mulf %22, %28 : vector<2x64xf32>
    %30 = vector.extract_strided_slice %29 {offsets = [0, 0], sizes = [2, 32], strides = [1, 1]} : vector<2x64xf32> to vector<2x32xf32>
    %c0_19 = arith.constant 0 : index
    %c0_20 = arith.constant 0 : index
    %31 = vector.load %arg8[%c0_19, %c0_20] : memref<2x32xf32, #tpu.memory_space<vmem>>, vector<1x32xf32>
    %32 = vector.broadcast %31 : vector<1x32xf32> to vector<2x32xf32>
    %33 = arith.mulf %30, %32 : vector<2x32xf32>
    %cst_21 = arith.constant dense<0.000000e+00> : vector<2xf32>
    %34 = vector.multi_reduction <add>, %33, %cst_21 [1] : vector<2x32xf32> to vector<2xf32>
    %35 = vector.shape_cast %34 : vector<2xf32> to vector<2x1xf32>
    %36 = vector.extract_strided_slice %29 {offsets = [0, 32], sizes = [2, 32], strides = [1, 1]} : vector<2x64xf32> to vector<2x32xf32>
    %c1 = arith.constant 1 : index
    %c0_22 = arith.constant 0 : index
    %37 = vector.load %arg8[%c1, %c0_22] : memref<2x32xf32, #tpu.memory_space<vmem>>, vector<1x32xf32>
    %38 = vector.broadcast %37 : vector<1x32xf32> to vector<2x32xf32>
    %39 = arith.mulf %36, %38 : vector<2x32xf32>
    %cst_23 = arith.constant dense<0.000000e+00> : vector<2xf32>
    %40 = vector.multi_reduction <add>, %39, %cst_23 [1] : vector<2x32xf32> to vector<2xf32>
    %41 = vector.shape_cast %40 : vector<2xf32> to vector<2x1xf32>
    %42 = tpu.concatenate %35, %41 in 1 : vector<2x1xf32>, vector<2x1xf32> -> vector<2x2xf32>
    %c0_24 = arith.constant 0 : index
    %c0_25 = arith.constant 0 : index
    %43 = vector.load %arg9[%c0_24, %c0_25] : memref<1x2xf32, #tpu.memory_space<vmem>>, vector<1x2xf32>
    %44 = vector.broadcast %43 : vector<1x2xf32> to vector<2x2xf32>
    %45 = arith.addf %42, %44 : vector<2x2xf32>
    %c0_26 = arith.constant 0 : index
    %c0_27 = arith.constant 0 : index
    %46 = vector.load %arg10[%c0_26, %c0_27] : memref<2x2xf32, #tpu.memory_space<vmem>>, vector<2x2xf32>
    tpu.vector_store %arg10[%c0_26, %c0_27], %45 {strides = array<i32>} : memref<2x2xf32, #tpu.memory_space<vmem>>, vector<2x2xf32>,
    return
  }
  func.func @transform_0(%arg0: i32) -> (i32, i32) {
    %c0_i32 = arith.constant 0 : i32
    %c0_i32_0 = arith.constant 0 : i32
    return %arg0, %c0_i32 : i32, i32
  }
  func.func @transform_1(%arg0: i32) -> (i32, i32) {
    %c0_i32 = arith.constant 0 : i32
    %c0_i32_0 = arith.constant 0 : i32
    return %arg0, %c0_i32 : i32, i32
  }
  func.func @transform_2(%arg0: i32) -> (i32, i32) {
    %c0_i32 = arith.constant 0 : i32
    %c0_i32_0 = arith.constant 0 : i32
    %c0_i32_1 = arith.constant 0 : i32
    return %c0_i32, %c0_i32_0 : i32, i32
  }
  func.func @transform_3(%arg0: i32) -> (i32, i32) {
    %c0_i32 = arith.constant 0 : i32
    %c0_i32_0 = arith.constant 0 : i32
    %c0_i32_1 = arith.constant 0 : i32
    return %c0_i32, %c0_i32_0 : i32, i32
  }
  func.func @transform_4(%arg0: i32) -> (i32, i32) {
    %c0_i32 = arith.constant 0 : i32
    %c0_i32_0 = arith.constant 0 : i32
    %c0_i32_1 = arith.constant 0 : i32
    return %c0_i32, %c0_i32_0 : i32, i32
  }
  func.func @transform_5(%arg0: i32) -> (i32, i32) {
    %c0_i32 = arith.constant 0 : i32
    %c0_i32_0 = arith.constant 0 : i32
    %c0_i32_1 = arith.constant 0 : i32
    return %c0_i32, %c0_i32_0 : i32, i32
  }
  func.func @transform_6(%arg0: i32) -> (i32, i32) {
    %c0_i32 = arith.constant 0 : i32
    %c0_i32_0 = arith.constant 0 : i32
    %c0_i32_1 = arith.constant 0 : i32
    return %c0_i32, %c0_i32_0 : i32, i32
  }
  func.func @transform_7(%arg0: i32) -> (i32, i32) {
    %c0_i32 = arith.constant 0 : i32
    %c0_i32_0 = arith.constant 0 : i32
    %c0_i32_1 = arith.constant 0 : i32
    return %c0_i32, %c0_i32_0 : i32, i32
  }
  func.func @transform_8(%arg0: i32) -> (i32, i32) {
    %c0_i32 = arith.constant 0 : i32
    %c0_i32_0 = arith.constant 0 : i32
    %c0_i32_1 = arith.constant 0 : i32
    return %c0_i32, %c0_i32_0 : i32, i32
  }
  func.func @transform_9(%arg0: i32) -> (i32, i32) {
    %c0_i32 = arith.constant 0 : i32
    %c0_i32_0 = arith.constant 0 : i32
    return %arg0, %c0_i32 : i32, i32
  }
}

</mosaic_0001>

<llo_original>
// kernel: qnetwork_forward.1
$region0: #{qnetwork_forward.1}
  #allocation0 [shape = 'u32[]', space=smem, size = 0x4, offset = 0x4, fixed_abs, tag = 'smem constant byte address 0x4 - core index']
  #allocation1 [shape = 'u32[144,128]{1,0:T(1,128)}', space=vmem, size = 0x12000, scoped, tag = 'internal scratch']
  %s0 = inlined_call_operand.vmem [shape: bf16[2,8], index: 0, kind: input, shape index: {}]
  %s1 = inlined_call_operand.vmem [shape: bf16[2,4], index: 1, kind: input, shape index: {}]
  %s2 = inlined_call_operand.vmem [shape: bf16[8,64], index: 2, kind: input, shape index: {}]
  %s3 = inlined_call_operand.vmem [shape: bf16[4,64], index: 3, kind: input, shape index: {}]
  %s4 = inlined_call_operand.vmem [shape: f32[1,64], index: 4, kind: input, shape index: {}]
  %s5 = inlined_call_operand.hbm [shape: bf16[64,64], index: 5, kind: input, shape index: {}]
  %s6 = inlined_call_operand.vmem [shape: f32[1,64], index: 6, kind: input, shape index: {}]
  %s7 = inlined_call_operand.vmem [shape: f32[2,32], index: 7, kind: input, shape index: {}]
  %s8 = inlined_call_operand.vmem [shape: f32[1,2], index: 8, kind: input, shape index: {}]
  %s9 = inlined_call_operand.vmem [shape: f32[2,2], index: 9, kind: output, shape index: {}]
  %s10 = sld [smem:[#allocation0]]
  $region50: #{qnetwork_forward.1} parent=0
    _
  %s12 = ssub.s32 1, %s10
  %s13 = scalar_select 0, %s12, %s10
  $region1: #{qnetwork_forward.1} parent=0
    #allocation2 [shape = 'u8[16384]{0}', space=vmem, size = 0x4000, scoped, tag = 'input window, operand 5, single buffered']
    #allocation3 [shape = 's32[1]{0}', space=sflag, size = 0x4, scoped, tag = 'scoped memory for qnetwork_forward.1']
    %14 = vsyncpa [#allocation3], 0
    // Predicated region
    $region2: #{qnetwork_forward.1} parent=1 // pred_check
      _
    $region3: #{qnetwork_forward.1} parent=1 // pred_check_branch
      %16 = sbr.rel (0) target = $region5
    $region4: #{qnetwork_forward.1} parent=1 // pred_region
      _
    $region5: #{qnetwork_forward.1} parent=1 // pred_fallthru
      _
    // Predicated region
    $region6: #{qnetwork_forward.1} parent=1 // pred_check
      _
    $region7: #{qnetwork_forward.1} parent=1 // pred_check_branch
      %18 = sbr.rel (0) target = $region9
    $region8: #{qnetwork_forward.1} parent=1 // pred_region
      _
    $region9: #{qnetwork_forward.1} parent=1 // pred_fallthru
      _
    // Predicated region
    $region10: #{qnetwork_forward.1} parent=1 // pred_check
      _
    $region11: #{qnetwork_forward.1} parent=1 // pred_check_branch
      %20 = sbr.rel (0) target = $region13
    $region12: #{qnetwork_forward.1} parent=1 // pred_region
      _
    $region13: #{qnetwork_forward.1} parent=1 // pred_fallthru
      _
    // Predicated region
    $region14: #{qnetwork_forward.1} parent=1 // pred_check
      _
    $region15: #{qnetwork_forward.1} parent=1 // pred_check_branch
      %22 = sbr.rel (0) target = $region17
    $region16: #{qnetwork_forward.1} parent=1 // pred_region
      _
    $region17: #{qnetwork_forward.1} parent=1 // pred_fallthru
      _
    // Predicated region
    $region18: #{qnetwork_forward.1} parent=1 // pred_check
      _
    $region19: #{qnetwork_forward.1} parent=1 // pred_check_branch
      %24 = sbr.rel (0) target = $region21
    $region20: #{qnetwork_forward.1} parent=1 // pred_region
      _
    $region21: #{qnetwork_forward.1} parent=1 // pred_fallthru
      _
    // Predicated region
    $region22: #{qnetwork_forward.1} parent=1 // pred_check
      _
    $region23: #{qnetwork_forward.1} parent=1 // pred_check_branch
      %26 = sbr.rel (0) target = $region25
    $region24: #{qnetwork_forward.1} parent=1 // pred_region
      %s28 = ssub.s32 512, 512
      %29 = vsyncadd [#allocation3], %s28
      %s30 = sshll.u32 [#allocation2], 4
      %s31 = int_to_ptr.vmem [resolvable:$true] %s30
      %36 = dma.hbm_to_vmem [thread:$0]  %s5, 512, %s31, [#allocation3], 64, 64, 4
    $region25: #{qnetwork_forward.1} parent=1 // pred_fallthru
      _
    // Predicated region
    $region26: #{qnetwork_forward.1} parent=1 // pred_check
      _
    $region27: #{qnetwork_forward.1} parent=1 // pred_check_branch
      %38 = sbr.rel (0) target = $region29
    $region28: #{qnetwork_forward.1} parent=1 // pred_region
      _
    $region29: #{qnetwork_forward.1} parent=1 // pred_fallthru
      _
    // Predicated region
    $region30: #{qnetwork_forward.1} parent=1 // pred_check
      _
    $region31: #{qnetwork_forward.1} parent=1 // pred_check_branch
      %40 = sbr.rel (0) target = $region33
    $region32: #{qnetwork_forward.1} parent=1 // pred_region
      _
    $region33: #{qnetwork_forward.1} parent=1 // pred_fallthru
      _
    // Predicated region
    $region34: #{qnetwork_forward.1} parent=1 // pred_check
      _
    $region35: #{qnetwork_forward.1} parent=1 // pred_check_branch
      %42 = sbr.rel (0) target = $region37
    $region36: #{qnetwork_forward.1} parent=1 // pred_region
      _
    $region37: #{qnetwork_forward.1} parent=1 // pred_fallthru
      _
    // Predicated region
    $region38: #{qnetwork_forward.1} parent=1 // pred_check
      _
    $region39: #{qnetwork_forward.1} parent=1 // pred_check_branch
      %44 = sbr.rel (0) target = $region41
    $region40: #{qnetwork_forward.1} parent=1 // pred_region
      %45 = dma.done [#allocation3], 512
    $region41: #{qnetwork_forward.1} parent=1 // pred_fallthru
      _
    %v47 = vld [vmem:[%s0] sm:$0x1]
    %v48 = vld [vmem:[%s2] sm:$0xf]
    %v49 = vld [vmem:[%s1] sm:$0x1]
    %v50 = vld [vmem:[%s3] sm:$0x3]
    %vm51 = vcmask 31744
    %v53 = vsel %vm51, %v49, 0
    %vm55 = vcmask 1041408
    %v57 = vsel %vm55, %v50, 0
    %59 = vmatprep.subr.bf16.mxu0 0
    %60 = vmatpush1.bf16.msra.mxu0 0
    %61 = vmatprep.subr.bf16.mxu0 0
    %62 = vmatpush1.bf16.msra.mxu0 0
    %63 = vmatprep.subr.bf16.mxu0 0
    %64 = vmatpush1.bf16.msra.mxu0 0
    %65 = vmatprep.subr.bf16.mxu0 0
    %66 = vmatpush1.bf16.msra.mxu0 0
    %67 = vmatprep.subr.bf16.mxu0 0
    %68 = vmatpush1.bf16.msra.mxu0 0
    %69 = vmatprep.subr.bf16.mxu0 0
    %70 = vmatpush1.bf16.msra.mxu0 0
    %71 = vmatprep.subr.bf16.mxu0 0
    %72 = vmatpush1.bf16.msra.mxu0 0
    %73 = vmatprep.subr.bf16.mxu0 0
    %74 = vmatpush1.bf16.msra.mxu0 %v57
    %75 = vmatprep.subr.bf16.mxu0 0
    %76 = vmatpush2.bf16.msra.mxu0 0
    %77 = vmatprep.subr.bf16.mxu0 0
    %78 = vmatpush2.bf16.msra.mxu0 0
    %79 = vmatprep.subr.bf16.mxu0 0
    %80 = vmatpush2.bf16.msra.mxu0 0
    %81 = vmatprep.subr.bf16.mxu0 0
    %82 = vmatpush2.bf16.msra.mxu0 0
    %83 = vmatprep.subr.bf16.mxu0 0
    %84 = vmatpush2.bf16.msra.mxu0 0
    %85 = vmatprep.subr.bf16.mxu0 0
    %86 = vmatpush2.bf16.msra.mxu0 0
    %87 = vmatprep.subr.bf16.mxu0 0
    %88 = vmatpush2.bf16.msra.mxu0 0
    %89 = vmatprep.subr.bf16.mxu0 0
    %90 = vmatpush2.bf16.msra.mxu0 0
    %91 = vmatprep.mubr.bf16.mxu0 0
    %92 = vmatmul.mubr.bf16.gmra.mxu0 %v53
    %v93 = vpop.f32.mrf.mxu0
    %v94 = vadd.f32 0.0, %v93
    %v95 = vpop.f32.mrf.mxu0
    %v96 = vpop.f32.mrf.mxu0
    %v97 = vpop.f32.mrf.mxu0
    %98 = vdwg.mxu0
    %vm99 = vcmask 64512
    %v101 = vsel %vm99, %v47, 0
    %vm103 = vcmask 1043456
    %v105 = vsel %vm103, %v48, 0
    %107 = vmatprep.subr.bf16.mxu0 0
    %108 = vmatpush1.bf16.msra.mxu0 0
    %109 = vmatprep.subr.bf16.mxu0 0
    %110 = vmatpush1.bf16.msra.mxu0 0
    %111 = vmatprep.subr.bf16.mxu0 0
    %112 = vmatpush1.bf16.msra.mxu0 0
    %113 = vmatprep.subr.bf16.mxu0 0
    %114 = vmatpush1.bf16.msra.mxu0 0
    %115 = vmatprep.subr.bf16.mxu0 0
    %116 = vmatpush1.bf16.msra.mxu0 0
    %117 = vmatprep.subr.bf16.mxu0 0
    %118 = vmatpush1.bf16.msra.mxu0 0
    %119 = vmatprep.subr.bf16.mxu0 0
    %120 = vmatpush1.bf16.msra.mxu0 0
    %121 = vmatprep.subr.bf16.mxu0 0
    %122 = vmatpush1.bf16.msra.mxu0 %v105
    %123 = vmatprep.subr.bf16.mxu0 0
    %124 = vmatpush2.bf16.msra.mxu0 0
    %125 = vmatprep.subr.bf16.mxu0 0
    %126 = vmatpush2.bf16.msra.mxu0 0
    %127 = vmatprep.subr.bf16.mxu0 0
    %128 = vmatpush2.bf16.msra.mxu0 0
    %129 = vmatprep.subr.bf16.mxu0 0
    %130 = vmatpush2.bf16.msra.mxu0 0
    %131 = vmatprep.subr.bf16.mxu0 0
    %132 = vmatpush2.bf16.msra.mxu0 0
    %133 = vmatprep.subr.bf16.mxu0 0
    %134 = vmatpush2.bf16.msra.mxu0 0
    %135 = vmatprep.subr.bf16.mxu0 0
    %136 = vmatpush2.bf16.msra.mxu0 0
    %137 = vmatprep.subr.bf16.mxu0 0
    %138 = vmatpush2.bf16.msra.mxu0 0
    %139 = vmatprep.mubr.bf16.mxu0 0
    %140 = vmatmul.mubr.bf16.gmra.mxu0 %v101
    %v141 = vpop.f32.mrf.mxu0
    %v142 = vadd.f32 %v94, %v141
    %v143 = vpop.f32.mrf.mxu0
    %v144 = vpop.f32.mrf.mxu0
    %v145 = vpop.f32.mrf.mxu0
    %146 = vdwg.mxu0
    %v147 = vld [vmem:[%s4] sm:$0x1]
    %v149 = vlaneseq
    %v150 = vshrl.u32 %v149, 7
    %v151 = vsub.s32 0, %v150
    %v152 = vrot.slane %v147, %v151
    %v154 = vadd.f32 %v142, %v152
    %v155 = vsub.f32 0.0, %v154
    %v156 = vmul.f32 %v155, 1.442695
    %v157 = vpow.pop %v156
    %v158 = vadd.f32 %v157, 1.0
    %v159 = vrcp.pop %v158
    %v160 = vmul.f32 %v154, %v159
    %v161 = vpack.c.bf16 %v160, %v160
    %v162 = vld [vmem:[#allocation2] sm:$0xf]
    %v163 = vld [vmem:[#allocation2 + $0x4] sm:$0xf]
    %v164 = vld [vmem:[#allocation2 + $0x8] sm:$0xf]
    %v165 = vld [vmem:[#allocation2 + $0xc] sm:$0xf]
    %v166 = vld [vmem:[#allocation2 + $0x10] sm:$0xf]
    %v167 = vld [vmem:[#allocation2 + $0x14] sm:$0xf]
    %v168 = vld [vmem:[#allocation2 + $0x18] sm:$0xf]
    %v169 = vld [vmem:[#allocation2 + $0x1c] sm:$0xf]
    %v170 = vld [vmem:[%s6] sm:$0x1]
    %v172 = vlaneseq
    %v173 = vshrl.u32 %v172, 7
    %v174 = vsub.s32 0, %v173
    %v175 = vrot.slane %v170, %v174
    %v185 = vunpack.c.l.b16 %v162
    %v186 = vunpack.c.l.b16 %v163
    %v187 = vunpack.c.l.b16 %v164
    %v188 = vunpack.c.l.b16 %v165
    %v189 = vunpack.c.l.b16 %v166
    %v190 = vunpack.c.l.b16 %v167
    %v191 = vunpack.c.l.b16 %v168
    %v192 = vunpack.c.l.b16 %v169
    %v193 = vpack.c.b16 %v186, %v185
    %v194 = vpack.c.b16 %v188, %v187
    %v195 = vpack.c.b16 %v190, %v189
    %v196 = vpack.c.b16 %v192, %v191
    %vm201 = vcmask 523264
    %v203 = vsel %vm201, %v161, 0
    %205 = vmatprep.subr.bf16.mxu0 0
    %206 = vmatpush1.bf16.msra.mxu0 0
    %207 = vmatprep.subr.bf16.mxu0 0
    %208 = vmatpush1.bf16.msra.mxu0 0
    %209 = vmatprep.subr.bf16.mxu0 0
    %210 = vmatpush1.bf16.msra.mxu0 0
    %211 = vmatprep.subr.bf16.mxu0 0
    %212 = vmatpush1.bf16.msra.mxu0 0
    %213 = vmatprep.subr.bf16.mxu0 0
    %214 = vmatpush1.bf16.msra.mxu0 %v196
    %215 = vmatprep.subr.bf16.mxu0 0
    %216 = vmatpush1.bf16.msra.mxu0 %v195
    %217 = vmatprep.subr.bf16.mxu0 0
    %218 = vmatpush1.bf16.msra.mxu0 %v194
    %219 = vmatprep.subr.bf16.mxu0 0
    %220 = vmatpush1.bf16.msra.mxu0 %v193
    %221 = vmatprep.subr.bf16.mxu0 0
    %222 = vmatpush2.bf16.msra.mxu0 0
    %223 = vmatprep.subr.bf16.mxu0 0
    %224 = vmatpush2.bf16.msra.mxu0 0
    %225 = vmatprep.subr.bf16.mxu0 0
    %226 = vmatpush2.bf16.msra.mxu0 0
    %227 = vmatprep.subr.bf16.mxu0 0
    %228 = vmatpush2.bf16.msra.mxu0 0
    %229 = vmatprep.subr.bf16.mxu0 0
    %230 = vmatpush2.bf16.msra.mxu0 0
    %231 = vmatprep.subr.bf16.mxu0 0
    %232 = vmatpush2.bf16.msra.mxu0 0
    %233 = vmatprep.subr.bf16.mxu0 0
    %234 = vmatpush2.bf16.msra.mxu0 0
    %235 = vmatprep.subr.bf16.mxu0 0
    %236 = vmatpush2.bf16.msra.mxu0 0
    %237 = vmatprep.mubr.bf16.mxu0 0
    %238 = vmatmul.mubr.bf16.gmra.mxu0 %v203
    %v239 = vpop.f32.mrf.mxu0
    %v240 = vadd.f32 %v175, %v239
    %v241 = vpop.f32.mrf.mxu0
    %v242 = vpop.f32.mrf.mxu0
    %v243 = vpop.f32.mrf.mxu0
    %244 = vdwg.mxu0
    %v245 = vsub.f32 0.0, %v240
    %v246 = vmul.f32 %v245, 1.442695
    %v247 = vpow.pop %v246
    %v248 = vadd.f32 %v247, 1.0
    %v249 = vrcp.pop %v248
    %v250 = vmul.f32 %v240, %v249
    %v251 = vld [vmem:[%s7] sm:$0x1]
    %v252 = vlaneseq
    %v253 = vshrl.u32 %v252, 7
    %v254 = vsub.s32 0, %v253
    %v255 = vrot.slane %v251, %v254
    %v256 = vmul.f32 %v250, %v255
    %vm257 = vcmask 254976
    %v258 = vsel %vm257, %v256, 0.0
    %259 = vadd.xlane.f32.xlu0 %v258
    %v260 = vpop.xlane.xlu0 %259
    %v261 = vld [vmem:[%s7 + $0x1] sm:$0x1]
    %v262 = vlaneseq
    %v263 = vshrl.u32 %v262, 7
    %v264 = vsub.s32 0, %v263
    %v265 = vrot.slane %v261, %v264
    %267 = vrot.lane.b32.xlu0 %v265, 32
    %v268 = vpop.permute.xlu0 %267
    %v270 = vmul.f32 %v250, %v268
    %272 = vrot.lane.b32.xlu0 %v270, 96
    %v273 = vpop.permute.xlu0 %272
    %v275 = vsel %vm257, %v273, 0.0
    %276 = vadd.xlane.f32.xlu0 %v275
    %v277 = vpop.xlane.xlu0 %276
    %vm278 = vcmask 7168
    %v279 = vsel %vm278, %v260, %v277
    %v280 = vld [vmem:[%s8] sm:$0x1]
    %v282 = vlaneseq
    %v283 = vshrl.u32 %v282, 7
    %v284 = vsub.s32 0, %v283
    %v285 = vrot.slane %v280, %v284
    %v287 = vadd.f32 %v279, %v285
    %vm288 = vcmask 9216
    %289 = vst.msk [vmem:[%s9] sm:$0x3] %vm288, %v287
    // Predicated region
    $region42: #{qnetwork_forward.1} parent=1 // pred_check
      _
    $region43: #{qnetwork_forward.1} parent=1 // pred_check_branch
      %291 = sbr.rel (0) target = $region45
    $region44: #{qnetwork_forward.1} parent=1 // pred_region
      _
    $region45: #{qnetwork_forward.1} parent=1 // pred_fallthru
      _
    // Predicated region
    $region46: #{qnetwork_forward.1} parent=1 // pred_check
      _
    $region47: #{qnetwork_forward.1} parent=1 // pred_check_branch
      %293 = sbr.rel (0) target = $region49
    $region48: #{qnetwork_forward.1} parent=1 // pred_region
      _
    $region49: #{qnetwork_forward.1} parent=1 // pred_fallthru
      _
    %294 = vsyncpa [#allocation3], 1

</llo_original>
